<compile_context>
chip_gen: v7x
topology: tpu7x:2x2x1
jax: 0.10.0
libtpu: 0.0.40
codegen_flags: <defaults>
</compile_context>

<pallas_src>
from functools import partial

import jax
import jax.numpy as jnp
from jax.experimental import pallas as pl
from jax.experimental.pallas import tpu as pltpu


# -----------------------------------------------------------------------------
# Kernels
# -----------------------------------------------------------------------------
def _fused_kernel(x_ref, wm_ref, w1t_ref, pvec_ref, w2_ref, b2_ref, o_ref):
    """Single-pass kernel: one (Bt, C, HW) block holds the whole spatial extent."""
    f32 = jnp.float32
    x = x_ref[...]                                            # (Bt, C, HW) native dtype

    # spatial_pool('att'): 1x1 conv C->1 as VPU broadcast-mul + sublane reduce.
    wm = wm_ref[...]                                          # (C, 1) f32
    logits = jnp.sum(x * wm[None, :, :], axis=1, keepdims=True)   # (Bt,1,HW) f32
    m = jnp.max(logits, axis=-1, keepdims=True)               # (Bt,1,1)
    e = jnp.exp(logits - m)                                   # (Bt,1,HW)
    denom = jnp.sum(e, axis=-1, keepdims=True)                # (Bt,1,1)
    ctx = jnp.sum(x * e, axis=2) / denom[:, :, 0]             # (Bt, C) f32 context

    # channel_add_conv: 1x1 conv -> LayerNorm([P,1,1]) -> ReLU -> 1x1 conv
    pv = pvec_ref[...]                                        # (3, P) = b1 / gamma / beta
    y1 = jnp.dot(ctx, w1t_ref[...], preferred_element_type=f32) + pv[0:1, :]   # (Bt, P)
    mu = jnp.mean(y1, axis=-1, keepdims=True)
    var = jnp.mean((y1 - mu) ** 2, axis=-1, keepdims=True)
    y1 = (y1 - mu) * jax.lax.rsqrt(var + 1e-5)
    y1 = jnp.maximum(y1 * pv[1:2, :] + pv[2:3, :], 0.0)

    # Second conv in column orientation -> (Bt, C, 1) with C on sublanes:
    # broadcasts along lanes into the big add with no relayout.
    w2 = w2_ref[...]                                          # (C, P) f32
    y2 = jnp.sum(w2[None, :, :] * y1[:, None, :], axis=-1, keepdims=True)
    y2 = y2 + b2_ref[...][None, :, :]                         # (Bt, C, 1)

    o_ref[...] = x + y2.astype(o_ref.dtype)


def _make_context_kernel(hw_total, hw_chunk, n_chunks):
    """Pass 1 of the chunked path: online-softmax context reduction over HW chunks,
    finalized into the (1, C, 1) channel_add term at the last chunk."""
    f32 = jnp.float32
    ragged = (hw_total % hw_chunk) != 0

    def kernel(x_ref, wm_ref, w1t_ref, pvec_ref, w2_ref, b2_ref, y2_ref,
               m_sc, l_sc, acc_sc):
        k = pl.program_id(1)

        @pl.when(k == 0)
        def _():
            m_sc[...] = jnp.full_like(m_sc, -jnp.inf)
            l_sc[...] = jnp.zeros_like(l_sc)
            acc_sc[...] = jnp.zeros_like(acc_sc)

        x = x_ref[...]                                        # (1, C, hw_chunk)
        wm = wm_ref[...]                                      # (C, 1) f32
        logits = jnp.sum(x * wm[None, :, :], axis=1, keepdims=True)   # (1,1,hwc) f32
        if ragged:                                            # mask lanes past HW in last chunk
            lane = jax.lax.broadcasted_iota(jnp.int32, (1, 1, hw_chunk), 2) + k * hw_chunk
            valid = lane < hw_total
            logits = jnp.where(valid, logits, f32(-1e30))

        m_old = m_sc[...]                                     # (1, 1)
        m_new = jnp.maximum(m_old, jnp.max(logits, axis=-1))  # (1, 1)
        alpha = jnp.exp(m_old - m_new)                        # (1, 1); == 0 at k == 0
        e = jnp.exp(logits - m_new[:, :, None])               # (1, 1, hwc); masked lanes -> 0
        xw = x * e                                            # (1, C, hwc) f32
        if ragged:
            xw = jnp.where(valid, xw, 0.0)                    # kill garbage * 0 (NaN) lanes
        l_sc[...] = alpha * l_sc[...] + jnp.sum(e, axis=-1)
        acc_sc[...] = alpha * acc_sc[...] + jnp.sum(xw, axis=-1)
        m_sc[...] = m_new

        @pl.when(k == n_chunks - 1)
        def _():
            ctx = acc_sc[...] / l_sc[...]                     # (1, C) f32
            pv = pvec_ref[...]
            y1 = jnp.dot(ctx, w1t_ref[...], preferred_element_type=f32) + pv[0:1, :]
            mu = jnp.mean(y1, axis=-1, keepdims=True)
            var = jnp.mean((y1 - mu) ** 2, axis=-1, keepdims=True)
            y1 = (y1 - mu) * jax.lax.rsqrt(var + 1e-5)
            y1 = jnp.maximum(y1 * pv[1:2, :] + pv[2:3, :], 0.0)
            w2 = w2_ref[...]                                  # (C, P)
            y2 = jnp.sum(w2[None, :, :] * y1[:, None, :], axis=-1, keepdims=True)
            y2_ref[...] = y2 + b2_ref[...][None, :, :]        # (1, C, 1)

    return kernel


def _broadcast_add_kernel(x_ref, y2_ref, o_ref):
    """Pass 2 of the chunked path: out = x + channel_add_term (lane broadcast)."""
    o_ref[...] = x_ref[...] + y2_ref[...].astype(o_ref.dtype)


# -----------------------------------------------------------------------------
# Wrapper
# -----------------------------------------------------------------------------
def _tpu_vmem_capacity():
    cap = 128 << 20
    try:
        info = pltpu.get_tpu_info()
        cap = int(getattr(info, "vmem_capacity_bytes", cap)) or cap
    except Exception:
        pass
    return cap


@partial(jax.jit, static_argnames=("block_budget_bytes",))
def context_block_forward(x, params, block_budget_bytes=None):
    B, C, H, W = x.shape
    HW = H * W
    P = params["w1"].shape[0]
    dt = x.dtype
    itemsize = x.dtype.itemsize
    f32 = jnp.float32

    xf = x.reshape(B, C, HW)            # no padding, no trailing slice (saves 2 HBM passes)

    # --- tiny f32 parameters, consolidated ---
    wm_col = params["w_mask"].reshape(C, 1).astype(f32)           # conv_mask weight (column)
    w1t = params["w1"].astype(f32).reshape(P, C).T                # (C, P)
    pvecs = jnp.stack([params["b1"].reshape(P),
                       params["gamma"].reshape(P),
                       params["beta"].reshape(P)], axis=0).astype(f32)   # (3, P)
    w2f = params["w2"].astype(f32).reshape(C, P)                  # (C, P)
    b2_col = params["b2"].reshape(C, 1).astype(f32)               # (C, 1)
    # NOTE: conv_mask bias (params["b_mask"]) is a uniform logit shift which
    # cancels exactly in the softmax -> intentionally not passed to the kernel.

    # --- generation-aware VMEM budgeting ---
    cap = _tpu_vmem_capacity()
    small_vmem = cap < (100 << 20)      # v7x-like part (64 MiB / TC)
    two_cores = small_vmem              # v7x has 2 TensorCores per chip
    vmem_ceiling = min(cap - (8 << 20), (56 << 20) if small_vmem else (100 << 20))
    block_budget = (block_budget_bytes if block_budget_bytes is not None
                    else ((11 << 20) if small_vmem else (20 << 20)))

    def fused_need(bt):
        blk = bt * C * HW * itemsize
        # 2x double-buffered input + 2x double-buffered output + ~2 f32 temporaries
        return 4 * blk + 2 * bt * C * HW * 4 + (2 << 20)

    bt = None
    for d in range(1, B + 1):
        if B % d:
            continue
        if d * C * HW * itemsize > block_budget:
            continue
        if fused_need(d) > vmem_ceiling:
            continue
        if two_cores and B >= 2 and (B // d) < 2:   # keep both v7x TCs busy
            continue
        bt = d

    use_chunked = (bt is None) or (two_cores and B == 1 and HW >= 1024)

    # =========================================================================
    # Fused single-pass path
    # =========================================================================
    if not use_chunked:
        limit_f = int(min(vmem_ceiling, max(fused_need(bt), 32 << 20)))
        cost = pl.CostEstimate(flops=5 * B * C * HW,
                               transcendentals=B * HW,
                               bytes_accessed=2 * B * C * HW * itemsize)
        out = pl.pallas_call(
            _fused_kernel,
            out_shape=jax.ShapeDtypeStruct((B, C, HW), dt),
            grid_spec=pltpu.PrefetchScalarGridSpec(
                num_scalar_prefetch=0,
                grid=(B // bt,),
                in_specs=[
                    pl.BlockSpec((bt, C, HW), lambda b: (b, 0, 0)),   # x (aliased with out)
                    pl.BlockSpec((C, 1), lambda b: (0, 0)),           # conv_mask weight
                    pl.BlockSpec((C, P), lambda b: (0, 0)),           # conv1 weight^T
                    pl.BlockSpec((3, P), lambda b: (0, 0)),           # b1 / gamma / beta
                    pl.BlockSpec((C, P), lambda b: (0, 0)),           # conv2 weight (C, P)
                    pl.BlockSpec((C, 1), lambda b: (0, 0)),           # conv2 bias (column)
                ],
                out_specs=pl.BlockSpec((bt, C, HW), lambda b: (b, 0, 0)),
            ),
            compiler_params=pltpu.CompilerParams(
                dimension_semantics=("parallel",),
                vmem_limit_bytes=limit_f),
            cost_estimate=cost,
            input_output_aliases={0: 0},
        )(xf, wm_col, w1t, pvecs, w2f, b2_col)
        return out.reshape(B, C, H, W)

    # =========================================================================
    # HW-chunked two-pass path
    # =========================================================================
    def _pick_chunk(per_lane_bytes):
        lanes = (block_budget // max(per_lane_bytes, 1)) // 128 * 128
        lanes = max(lanes, 512)                 # >= 512-lane chunks
        return min(lanes, HW)

    hwc1 = _pick_chunk(C * (2 * itemsize + 2 * 4))        # in (dbl-buf) + f32 temps
    hwc2 = _pick_chunk(4 * C * itemsize)                  # in + out, both dbl-buffered
    if two_cores and B == 1 and HW >= 256:
        # Keep >= 2 chunks in the embarrassingly-parallel epilogue so both
        # v7x TensorCores get a share of the bulk of the bytes.
        half = ((HW // 2 + 127) // 128) * 128
        hwc2 = min(hwc2, max(half, 128))
    n1 = pl.cdiv(HW, hwc1)
    n2 = pl.cdiv(HW, hwc2)

    need1 = C * hwc1 * (2 * itemsize + 2 * 4) + (2 << 20)
    need2 = 4 * C * hwc2 * itemsize + (2 << 20)
    limit1 = int(min(vmem_ceiling, max(need1, 32 << 20)))
    limit2 = int(min(vmem_ceiling, max(need2, 32 << 20)))

    # ---- pass 1: context reduction -> channel_add term (B, C, 1) f32 ----
    cost1 = pl.CostEstimate(flops=4 * B * C * HW,
                            transcendentals=B * HW,
                            bytes_accessed=B * C * HW * itemsize + B * C * 4)
    y2 = pl.pallas_call(
        _make_context_kernel(HW, hwc1, n1),
        out_shape=jax.ShapeDtypeStruct((B, C, 1), f32),
        grid_spec=pltpu.PrefetchScalarGridSpec(
            num_scalar_prefetch=0,
            grid=(B, n1),
            in_specs=[
                pl.BlockSpec((1, C, hwc1), lambda b, k: (b, 0, k)),
                pl.BlockSpec((C, 1), lambda b, k: (0, 0)),
                pl.BlockSpec((C, P), lambda b, k: (0, 0)),
                pl.BlockSpec((3, P), lambda b, k: (0, 0)),
                pl.BlockSpec((C, P), lambda b, k: (0, 0)),
                pl.BlockSpec((C, 1), lambda b, k: (0, 0)),
            ],
            out_specs=pl.BlockSpec((1, C, 1), lambda b, k: (b, 0, 0)),
            scratch_shapes=[pltpu.VMEM((1, 1), f32),      # running max
                            pltpu.VMEM((1, 1), f32),      # running denom
                            pltpu.VMEM((1, C), f32)],     # running weighted sum
        ),
        compiler_params=pltpu.CompilerParams(
            dimension_semantics=("parallel", "arbitrary"),
            vmem_limit_bytes=limit1),
        cost_estimate=cost1,
    )(xf, wm_col, w1t, pvecs, w2f, b2_col)

    # ---- pass 2: out = x + channel_add term (parallel over batch & HW chunks) ----
    cost2 = pl.CostEstimate(flops=B * C * HW,
                            transcendentals=0,
                            bytes_accessed=2 * B * C * HW * itemsize)
    out = pl.pallas_call(
        _broadcast_add_kernel,
        out_shape=jax.ShapeDtypeStruct((B, C, HW), dt),
        grid_spec=pltpu.PrefetchScalarGridSpec(
            num_scalar_prefetch=0,
            grid=(B, n2),
            in_specs=[
                pl.BlockSpec((1, C, hwc2), lambda b, k: (b, 0, k)),
                pl.BlockSpec((1, C, 1), lambda b, k: (b, 0, 0)),
            ],
            out_specs=pl.BlockSpec((1, C, hwc2), lambda b, k: (b, 0, k)),
        ),
        compiler_params=pltpu.CompilerParams(
            dimension_semantics=("parallel", "parallel"),
            vmem_limit_bytes=limit2),
        cost_estimate=cost2,
        input_output_aliases={0: 0},
    )(xf, y2)

    return out.reshape(B, C, H, W)


# -----------------------------------------------------------------------------
# Pure-JAX reference mirroring the PyTorch forward
# -----------------------------------------------------------------------------
def context_block_reference(x, params):
    B, C, H, W = x.shape
    HW = H * W
    xf = x.reshape(B, C, HW).astype(jnp.float32)
    # spatial_pool ('att')
    mask = jnp.einsum("oc,bch->boh", params["w_mask"], xf) + params["b_mask"][:, :, None]
    mask = jax.nn.softmax(mask, axis=-1)
    context = jnp.einsum("bch,boh->bco", xf, mask)                          # (B, C, 1)
    # channel_add_conv
    y1 = jnp.einsum("pc,bco->bpo", params["w1"], context) + params["b1"][None]
    mu = jnp.mean(y1, axis=1, keepdims=True)
    var = jnp.mean((y1 - mu) ** 2, axis=1, keepdims=True)
    y1 = (y1 - mu) / jnp.sqrt(var + 1e-5) * params["gamma"][None] + params["beta"][None]
    y1 = jnp.maximum(y1, 0.0)
    y2 = jnp.einsum("cp,bpo->bco", params["w2"], y1) + params["b2"][None]   # (B, C, 1)
    return x + y2[..., None]


if __name__ == "__main__":
    # Shapes consistent with the module: inplanes=16, ratio=0.25 -> planes=4.
    B, C, H, W = 2, 16, 16, 16
    ratio = 0.25
    P = int(C * ratio)

    key = jax.random.PRNGKey(0)
    keys = jax.random.split(key, 12)
    # Note: PyTorch reset_parameters() zero-inits the last conv (channel_add
    # term identically 0); small random weights here exercise the full path.
    params = {
        "w_mask": jax.random.normal(keys[0], (1, C), jnp.float32) * 0.3,
        "b_mask": jax.random.normal(keys[1], (1, 1), jnp.float32) * 0.1,
        "w1": jax.random.normal(keys[2], (P, C), jnp.float32) * 0.2,
        "b1": jax.random.normal(keys[3], (P, 1), jnp.float32) * 0.1,
        "gamma": jnp.ones((P, 1), jnp.float32) + 0.1 * jax.random.normal(keys[4], (P, 1), jnp.float32),
        "beta": 0.1 * jax.random.normal(keys[5], (P, 1), jnp.float32),
        "w2": jax.random.normal(keys[6], (C, P), jnp.float32) * 0.2,
        "b2": jax.random.normal(keys[7], (C, 1), jnp.float32) * 0.1,
    }

    def check(xin, name, **kw):
        out = jax.block_until_ready(context_block_forward(xin, params, **kw))
        ref = context_block_reference(xin, params)
        assert out.shape == xin.shape, f"bad shape ({name})"
        assert jnp.allclose(out, ref, atol=2e-3, rtol=2e-3), f"mismatch vs reference ({name})"

    # 1) Fused path, lane-aligned HW (16x16 = 256).
    check(jax.random.normal(keys[8], (B, C, H, W), jnp.float32), "fused / aligned HW")
    # 2) Fused path, ragged HW (12x12 = 144) with B=1 — no wrapper pad/slice.
    check(jax.random.normal(keys[9], (1, C, 12, 12), jnp.float32), "fused / ragged HW")
    # 3) Chunked two-pass path (forced via a tiny block budget), even chunks.
    check(jax.random.normal(keys[10], (2, C, 32, 32), jnp.float32),
          "chunked / even chunks", block_budget_bytes=32 * 1024)
    # 4) Chunked two-pass path with a ragged last chunk (30x30 = 900 -> 512 + 388).
    check(jax.random.normal(keys[11], (1, C, 30, 30), jnp.float32),
          "chunked / ragged last chunk", block_budget_bytes=16 * 1024)

    print("KERNEL_OK")
</pallas_src>

<mosaic_0001>
module attributes {stable_mosaic.version = 11 : i64} {
  func.func @_fused_kernel(%arg0: i32, %arg1: memref<2x16x256xf32, #tpu.memory_space<vmem>>, %arg2: memref<16x1xf32, #tpu.memory_space<vmem>>, %arg3: memref<16x4xf32, #tpu.memory_space<vmem>>, %arg4: memref<3x4xf32, #tpu.memory_space<vmem>>, %arg5: memref<16x4xf32, #tpu.memory_space<vmem>>, %arg6: memref<16x1xf32, #tpu.memory_space<vmem>>, %arg7: memref<2x16x256xf32, #tpu.memory_space<vmem>>) attributes {dimension_semantics = [#tpu.dimension_semantics<parallel>], iteration_bounds = array<i64: 1>, scalar_prefetch = 0 : i64, scratch_operands = 0 : i64, tpu.core_type = #tpu.core_type<tc>, window_params = [{transform_indices = @transform_0, window_bounds = array<i64: 2, 16, 256>}, {pipeline_mode = #tpu.pipeline_mode<synchronous>, transform_indices = @transform_1, window_bounds = array<i64: 16, 1>}, {pipeline_mode = #tpu.pipeline_mode<synchronous>, transform_indices = @transform_2, window_bounds = array<i64: 16, 4>}, {pipeline_mode = #tpu.pipeline_mode<synchronous>, transform_indices = @transform_3, window_bounds = array<i64: 3, 4>}, {pipeline_mode = #tpu.pipeline_mode<synchronous>, transform_indices = @transform_4, window_bounds = array<i64: 16, 4>}, {pipeline_mode = #tpu.pipeline_mode<synchronous>, transform_indices = @transform_5, window_bounds = array<i64: 16, 1>}, {transform_indices = @transform_6, window_bounds = array<i64: 2, 16, 256>}]} {
    %c0 = arith.constant 0 : index
    %c0_0 = arith.constant 0 : index
    %c0_1 = arith.constant 0 : index
    %0 = vector.load %arg1[%c0, %c0_0, %c0_1] : memref<2x16x256xf32, #tpu.memory_space<vmem>>, vector<2x16x256xf32>
    %c0_2 = arith.constant 0 : index
    %c0_3 = arith.constant 0 : index
    %1 = vector.load %arg2[%c0_2, %c0_3] : memref<16x1xf32, #tpu.memory_space<vmem>>, vector<16x1xf32>
    %2 = vector.shape_cast %1 : vector<16x1xf32> to vector<1x16x1xf32>
    %3 = vector.broadcast %2 : vector<1x16x1xf32> to vector<2x16x256xf32>
    %4 = arith.mulf %0, %3 : vector<2x16x256xf32>
    %cst = arith.constant dense<0.000000e+00> : vector<2x256xf32>
    %5 = vector.multi_reduction <add>, %4, %cst [1] : vector<2x16x256xf32> to vector<2x256xf32>
    %6 = vector.shape_cast %5 : vector<2x256xf32> to vector<2x1x256xf32>
    %cst_4 = arith.constant dense<0xFF800000> : vector<2x1xf32>
    %7 = vector.multi_reduction <maximumf>, %6, %cst_4 [2] : vector<2x1x256xf32> to vector<2x1xf32>
    %8 = vector.shape_cast %7 : vector<2x1xf32> to vector<2x1x1xf32>
    %9 = vector.broadcast %8 : vector<2x1x1xf32> to vector<2x1x256xf32>
    %10 = arith.subf %6, %9 : vector<2x1x256xf32>
    %11 = math.exp %10 : vector<2x1x256xf32>
    %cst_5 = arith.constant dense<0.000000e+00> : vector<2x1xf32>
    %12 = vector.multi_reduction <add>, %11, %cst_5 [2] : vector<2x1x256xf32> to vector<2x1xf32>
    %13 = vector.shape_cast %12 : vector<2x1xf32> to vector<2x1x1xf32>
    %14 = vector.broadcast %11 : vector<2x1x256xf32> to vector<2x16x256xf32>
    %15 = arith.mulf %0, %14 : vector<2x16x256xf32>
    %cst_6 = arith.constant dense<0.000000e+00> : vector<2x16xf32>
    %16 = vector.multi_reduction <add>, %15, %cst_6 [2] : vector<2x16x256xf32> to vector<2x16xf32>
    %17 = vector.shape_cast %13 : vector<2x1x1xf32> to vector<2x1xf32>
    %18 = vector.broadcast %17 : vector<2x1xf32> to vector<2x16xf32>
    %19 = arith.divf %16, %18 : vector<2x16xf32>
    %c0_7 = arith.constant 0 : index
    %c0_8 = arith.constant 0 : index
    %20 = vector.load %arg4[%c0_7, %c0_8] : memref<3x4xf32, #tpu.memory_space<vmem>>, vector<3x4xf32>
    %c0_9 = arith.constant 0 : index
    %c0_10 = arith.constant 0 : index
    %21 = vector.load %arg3[%c0_9, %c0_10] : memref<16x4xf32, #tpu.memory_space<vmem>>, vector<16x4xf32>
    %cst_11 = arith.constant dense<0.000000e+00> : vector<2x4xf32>
    %22 = tpu.matmul %19, %21, %cst_11 {dimension_numbers = #tpu.dot_dimension_numbers<[1], [0], [0], [1], [0, 0, 1, 1], [], []>} : vector<2x16xf32>, vector<16x4xf32>, vector<2x4xf32> -> vector<2x4xf32>
    %23 = vector.extract_strided_slice %20 {offsets = [0, 0], sizes = [1, 4], strides = [1, 1]} : vector<3x4xf32> to vector<1x4xf32>
    %24 = vector.broadcast %23 : vector<1x4xf32> to vector<2x4xf32>
    %25 = arith.addf %22, %24 : vector<2x4xf32>
    %cst_12 = arith.constant dense<0.000000e+00> : vector<2xf32>
    %26 = vector.multi_reduction <add>, %25, %cst_12 [1] : vector<2x4xf32> to vector<2xf32>
    %27 = vector.shape_cast %26 : vector<2xf32> to vector<2x1xf32>
    %cst_13 = arith.constant 4.000000e+00 : f32
    %28 = vector.broadcast %cst_13 : f32 to vector<2x1xf32>
    %29 = arith.divf %27, %28 : vector<2x1xf32>
    %30 = vector.broadcast %29 : vector<2x1xf32> to vector<2x4xf32>
    %31 = arith.subf %25, %30 : vector<2x4xf32>
    %32 = arith.mulf %31, %31 : vector<2x4xf32>
    %cst_14 = arith.constant dense<0.000000e+00> : vector<2xf32>
    %33 = vector.multi_reduction <add>, %32, %cst_14 [1] : vector<2x4xf32> to vector<2xf32>
    %34 = vector.shape_cast %33 : vector<2xf32> to vector<2x1xf32>
    %cst_15 = arith.constant 4.000000e+00 : f32
    %35 = vector.broadcast %cst_15 : f32 to vector<2x1xf32>
    %36 = arith.divf %34, %35 : vector<2x1xf32>
    %37 = vector.broadcast %29 : vector<2x1xf32> to vector<2x4xf32>
    %38 = arith.subf %25, %37 : vector<2x4xf32>
    %cst_16 = arith.constant 9.99999974E-6 : f32
    %39 = vector.broadcast %cst_16 : f32 to vector<2x1xf32>
    %40 = arith.addf %36, %39 : vector<2x1xf32>
    %41 = math.rsqrt %40 : vector<2x1xf32>
    %42 = vector.broadcast %41 : vector<2x1xf32> to vector<2x4xf32>
    %43 = arith.mulf %38, %42 : vector<2x4xf32>
    %44 = vector.extract_strided_slice %20 {offsets = [1, 0], sizes = [1, 4], strides = [1, 1]} : vector<3x4xf32> to vector<1x4xf32>
    %45 = vector.broadcast %44 : vector<1x4xf32> to vector<2x4xf32>
    %46 = arith.mulf %43, %45 : vector<2x4xf32>
    %47 = vector.extract_strided_slice %20 {offsets = [2, 0], sizes = [1, 4], strides = [1, 1]} : vector<3x4xf32> to vector<1x4xf32>
    %48 = vector.broadcast %47 : vector<1x4xf32> to vector<2x4xf32>
    %49 = arith.addf %46, %48 : vector<2x4xf32>
    %cst_17 = arith.constant 0.000000e+00 : f32
    %50 = vector.broadcast %cst_17 : f32 to vector<2x4xf32>
    %51 = arith.maximumf %49, %50 : vector<2x4xf32>
    %c0_18 = arith.constant 0 : index
    %c0_19 = arith.constant 0 : index
    %52 = vector.load %arg5[%c0_18, %c0_19] : memref<16x4xf32, #tpu.memory_space<vmem>>, vector<16x4xf32>
    %53 = vector.shape_cast %52 : vector<16x4xf32> to vector<1x16x4xf32>
    %54 = vector.shape_cast %51 : vector<2x4xf32> to vector<2x1x4xf32>
    %55 = vector.broadcast %53 : vector<1x16x4xf32> to vector<2x16x4xf32>
    %56 = vector.broadcast %54 : vector<2x1x4xf32> to vector<2x16x4xf32>
    %57 = arith.mulf %55, %56 : vector<2x16x4xf32>
    %cst_20 = arith.constant dense<0.000000e+00> : vector<2x16xf32>
    %58 = vector.multi_reduction <add>, %57, %cst_20 [2] : vector<2x16x4xf32> to vector<2x16xf32>
    %59 = vector.shape_cast %58 : vector<2x16xf32> to vector<2x16x1xf32>
    %c0_21 = arith.constant 0 : index
    %c0_22 = arith.constant 0 : index
    %60 = vector.load %arg6[%c0_21, %c0_22] : memref<16x1xf32, #tpu.memory_space<vmem>>, vector<16x1xf32>
    %61 = vector.shape_cast %60 : vector<16x1xf32> to vector<1x16x1xf32>
    %62 = vector.broadcast %61 : vector<1x16x1xf32> to vector<2x16x1xf32>
    %63 = arith.addf %59, %62 : vector<2x16x1xf32>
    %64 = vector.broadcast %63 : vector<2x16x1xf32> to vector<2x16x256xf32>
    %65 = arith.addf %0, %64 : vector<2x16x256xf32>
    %c0_23 = arith.constant 0 : index
    %c0_24 = arith.constant 0 : index
    %c0_25 = arith.constant 0 : index
    %66 = vector.load %arg7[%c0_23, %c0_24, %c0_25] : memref<2x16x256xf32, #tpu.memory_space<vmem>>, vector<2x16x256xf32>
    tpu.vector_store %arg7[%c0_23, %c0_24, %c0_25], %65 {strides = array<i32>} : memref<2x16x256xf32, #tpu.memory_space<vmem>>, vector<2x16x256xf32>,
    return
  }
  func.func @transform_0(%arg0: i32) -> (i32, i32, i32) {
    %c0_i32 = arith.constant 0 : i32
    %c0_i32_0 = arith.constant 0 : i32
    %c0_i32_1 = arith.constant 0 : i32
    return %arg0, %c0_i32, %c0_i32_0 : i32, i32, i32
  }
  func.func @transform_1(%arg0: i32) -> (i32, i32) {
    %c0_i32 = arith.constant 0 : i32
    %c0_i32_0 = arith.constant 0 : i32
    %c0_i32_1 = arith.constant 0 : i32
    return %c0_i32, %c0_i32_0 : i32, i32
  }
  func.func @transform_2(%arg0: i32) -> (i32, i32) {
    %c0_i32 = arith.constant 0 : i32
    %c0_i32_0 = arith.constant 0 : i32
    %c0_i32_1 = arith.constant 0 : i32
    return %c0_i32, %c0_i32_0 : i32, i32
  }
  func.func @transform_3(%arg0: i32) -> (i32, i32) {
    %c0_i32 = arith.constant 0 : i32
    %c0_i32_0 = arith.constant 0 : i32
    %c0_i32_1 = arith.constant 0 : i32
    return %c0_i32, %c0_i32_0 : i32, i32
  }
  func.func @transform_4(%arg0: i32) -> (i32, i32) {
    %c0_i32 = arith.constant 0 : i32
    %c0_i32_0 = arith.constant 0 : i32
    %c0_i32_1 = arith.constant 0 : i32
    return %c0_i32, %c0_i32_0 : i32, i32
  }
  func.func @transform_5(%arg0: i32) -> (i32, i32) {
    %c0_i32 = arith.constant 0 : i32
    %c0_i32_0 = arith.constant 0 : i32
    %c0_i32_1 = arith.constant 0 : i32
    return %c0_i32, %c0_i32_0 : i32, i32
  }
  func.func @transform_6(%arg0: i32) -> (i32, i32, i32) {
    %c0_i32 = arith.constant 0 : i32
    %c0_i32_0 = arith.constant 0 : i32
    %c0_i32_1 = arith.constant 0 : i32
    return %arg0, %c0_i32, %c0_i32_0 : i32, i32, i32
  }
}

</mosaic_0001>

<llo_original>
// kernel: context_block_forward.1
$region0: #{context_block_forward.1}
  #allocation0 [shape = 'u32[]', space=smem, size = 0x4, offset = 0x4, fixed_abs, tag = 'smem constant byte address 0x4 - core index']
  #allocation1 [shape = 'u32[144,128]{1,0:T(1,128)}', space=vmem, size = 0x12000, scoped, tag = 'internal scratch']
  %s0 = inlined_call_operand.vmem [shape: f32[2,16,256], index: 0, kind: input, shape index: {}, may-alias: {0,6}]
  %s1 = inlined_call_operand.vmem [shape: f32[16,1], index: 1, kind: input, shape index: {}]
  %s2 = inlined_call_operand.vmem [shape: f32[16,4], index: 2, kind: input, shape index: {}]
  %s3 = inlined_call_operand.vmem [shape: f32[3,4], index: 3, kind: input, shape index: {}]
  %s4 = inlined_call_operand.vmem [shape: f32[16,4], index: 4, kind: input, shape index: {}]
  %s5 = inlined_call_operand.vmem [shape: f32[16,1], index: 5, kind: input, shape index: {}]
  %s6 = inlined_call_operand.vmem [shape: f32[2,16,256], index: 6, kind: output, shape index: {}, may-alias: {0,6}]
  %s7 = sld [smem:[#allocation0]]
  $region34: #{context_block_forward.1} parent=0
    _
  %s9 = ssub.s32 1, %s7
  %s10 = scalar_select 0, %s9, %s7
  // Predicated region
  $region2: #{context_block_forward.1} parent=0 // pred_check
    _
  $region3: #{context_block_forward.1} parent=0 // pred_check_branch
    %12 = sbr.rel (0) target = $region5
  $region4: #{context_block_forward.1} parent=0 // pred_region
    _
  $region5: #{context_block_forward.1} parent=0 // pred_fallthru
    _
  // Predicated region
  $region6: #{context_block_forward.1} parent=0 // pred_check
    _
  $region7: #{context_block_forward.1} parent=0 // pred_check_branch
    %14 = sbr.rel (0) target = $region9
  $region8: #{context_block_forward.1} parent=0 // pred_region
    _
  $region9: #{context_block_forward.1} parent=0 // pred_fallthru
    _
  // Predicated region
  $region10: #{context_block_forward.1} parent=0 // pred_check
    _
  $region11: #{context_block_forward.1} parent=0 // pred_check_branch
    %16 = sbr.rel (0) target = $region13
  $region12: #{context_block_forward.1} parent=0 // pred_region
    _
  $region13: #{context_block_forward.1} parent=0 // pred_fallthru
    _
  // Predicated region
  $region14: #{context_block_forward.1} parent=0 // pred_check
    _
  $region15: #{context_block_forward.1} parent=0 // pred_check_branch
    %18 = sbr.rel (0) target = $region17
  $region16: #{context_block_forward.1} parent=0 // pred_region
    _
  $region17: #{context_block_forward.1} parent=0 // pred_fallthru
    _
  // Predicated region
  $region18: #{context_block_forward.1} parent=0 // pred_check
    _
  $region19: #{context_block_forward.1} parent=0 // pred_check_branch
    %20 = sbr.rel (0) target = $region21
  $region20: #{context_block_forward.1} parent=0 // pred_region
    _
  $region21: #{context_block_forward.1} parent=0 // pred_fallthru
    _
  // Predicated region
  $region22: #{context_block_forward.1} parent=0 // pred_check
    _
  $region23: #{context_block_forward.1} parent=0 // pred_check_branch
    %22 = sbr.rel (0) target = $region25
  $region24: #{context_block_forward.1} parent=0 // pred_region
    _
  $region25: #{context_block_forward.1} parent=0 // pred_fallthru
    _
  %v23 = vld [vmem:[%s0] sm:$0xff]
  %v24 = vld [vmem:[%s0 + $0x8] sm:$0xff]
  %v25 = vld [vmem:[%s0 + $0x10] sm:$0xff]
  %v26 = vld [vmem:[%s0 + $0x18] sm:$0xff]
  %v27 = vld [vmem:[%s0 + $0x20] sm:$0xff]
  %v28 = vld [vmem:[%s0 + $0x28] sm:$0xff]
  %v29 = vld [vmem:[%s0 + $0x30] sm:$0xff]
  %v30 = vld [vmem:[%s0 + $0x38] sm:$0xff]
  %v31 = vld [vmem:[%s1] sm:$0xff]
  %v32 = vld [vmem:[%s1 + $0x8] sm:$0xff]
  %34 = vset.pattern.permute.xlu0 0
  %35 = vperm.xlu0 %34, %v31
  %v36 = vpop.permute.xlu0 %35
  %39 = vset.pattern.permute.xlu0 0
  %40 = vperm.xlu0 %39, %v32
  %v41 = vpop.permute.xlu0 %40
  %v43 = vmul.f32 %v23, %v36
  %v44 = vmul.f32 %v24, %v36
  %v45 = vmul.f32 %v25, %v41
  %v46 = vmul.f32 %v26, %v41
  %v47 = vmul.f32 %v27, %v36
  %v48 = vmul.f32 %v28, %v36
  %v49 = vmul.f32 %v29, %v41
  %v50 = vmul.f32 %v30, %v41
  %v51 = vadd.f32 %v43, %v45
  %v52 = vrot.slane %v51, 4
  %v53 = vadd.f32 %v51, %v52
  %v54 = vrot.slane %v53, 2
  %v55 = vadd.f32 %v53, %v54
  %v56 = vrot.slane %v55, 1
  %v57 = vadd.f32 %v55, %v56
  %v58 = vadd.f32 %v44, %v46
  %v59 = vrot.slane %v58, 4
  %v60 = vadd.f32 %v58, %v59
  %v61 = vrot.slane %v60, 2
  %v62 = vadd.f32 %v60, %v61
  %v63 = vrot.slane %v62, 1
  %v64 = vadd.f32 %v62, %v63
  %v65 = vadd.f32 %v47, %v49
  %v66 = vrot.slane %v65, 4
  %v67 = vadd.f32 %v65, %v66
  %v68 = vrot.slane %v67, 2
  %v69 = vadd.f32 %v67, %v68
  %v70 = vrot.slane %v69, 1
  %v71 = vadd.f32 %v69, %v70
  %v72 = vadd.f32 %v48, %v50
  %v73 = vrot.slane %v72, 4
  %v74 = vadd.f32 %v72, %v73
  %v75 = vrot.slane %v74, 2
  %v76 = vadd.f32 %v74, %v75
  %v77 = vrot.slane %v76, 1
  %v78 = vadd.f32 %v76, %v77
  %v79 = vmax.f32 %v57, %v64
  %80 = vmax.xlane.f32.xlu0 %v79
  %v81 = vpop.xlane.xlu0 %80
  %v82 = vmax.f32 %v71, %v78
  %83 = vmax.xlane.f32.xlu0 %v82
  %v84 = vpop.xlane.xlu0 %83
  %v85 = vsub.f32 %v57, %v81
  %v86 = vsub.f32 %v64, %v81
  %v87 = vsub.f32 %v71, %v84
  %v88 = vsub.f32 %v78, %v84
  %v89 = vmul.f32 %v85, 1.442695
  %v90 = vpow.pop %v89
  %v91 = vmul.f32 %v86, 1.442695
  %v92 = vpow.pop %v91
  %v93 = vmul.f32 %v87, 1.442695
  %v94 = vpow.pop %v93
  %v95 = vmul.f32 %v88, 1.442695
  %v96 = vpow.pop %v95
  %v97 = vadd.f32 %v90, %v92
  %98 = vadd.xlane.f32.xlu0 %v97
  %v99 = vpop.xlane.xlu0 %98
  %v100 = vadd.f32 %v94, %v96
  %101 = vadd.xlane.f32.xlu0 %v100
  %v102 = vpop.xlane.xlu0 %101
  %v103 = vmul.f32 %v23, %v90
  %v104 = vmul.f32 %v24, %v92
  %v105 = vmul.f32 %v25, %v90
  %v106 = vmul.f32 %v26, %v92
  %v107 = vmul.f32 %v27, %v94
  %v108 = vmul.f32 %v28, %v96
  %v109 = vmul.f32 %v29, %v94
  %v110 = vmul.f32 %v30, %v96
  %v111 = vadd.f32 %v103, %v104
  %112 = vadd.xlane.f32.xlu0 %v111
  %v113 = vpop.xlane.xlu0 %112
  %v114 = vadd.f32 %v105, %v106
  %115 = vadd.xlane.f32.xlu0 %v114
  %v116 = vpop.xlane.xlu0 %115
  %v117 = vadd.f32 %v107, %v108
  %118 = vadd.xlane.f32.xlu0 %v117
  %v119 = vpop.xlane.xlu0 %118
  %v120 = vadd.f32 %v109, %v110
  %121 = vadd.xlane.f32.xlu0 %v120
  %v122 = vpop.xlane.xlu0 %121
  %v123 = vrcp.pop %v99
  %v124 = vmul.f32 %v113, %v123
  %v125 = vmul.f32 %v116, %v123
  %v126 = vrcp.pop %v102
  %v127 = vmul.f32 %v119, %v126
  %v128 = vmul.f32 %v122, %v126
  %v129 = vld [vmem:[%s3] sm:$0x7]
  %v130 = vld [vmem:[%s2] sm:$0xff]
  %v131 = vld [vmem:[%s2 + $0x8] sm:$0xff]
  %v132 = vlaneseq
  %v133 = vshrl.u32 %v132, 7
  %v134 = vsub.s32 0, %v133
  %v135 = vrot.slane %v129, %v134
  %v140 = vlaneseq
  %v141 = vand.u32 %v140, 127
  %v142 = vlaneseq
  %v143 = vshrl.u32 %v142, 7
  %v144 = vsub.s32 %v141, %v143
  %v145 = vrot.slane %v124, %v144
  %v146 = vadd.s32 %v141, 4294967288
  %v147 = vlaneseq
  %v148 = vshrl.u32 %v147, 7
  %v149 = vsub.s32 %v146, %v148
  %v150 = vrot.slane %v125, %v149
  %vm151 = vcmask 130112
  %v152 = vsel %vm151, %v150, %v145
  %v153 = vlaneseq
  %v154 = vshrl.u32 %v153, 7
  %v155 = vsub.s32 %v141, %v154
  %v156 = vrot.slane %v127, %v155
  %v157 = vlaneseq
  %v158 = vshrl.u32 %v157, 7
  %v159 = vsub.s32 %v146, %v158
  %v160 = vrot.slane %v128, %v159
  %v161 = vsel %vm151, %v160, %v156
  %vm162 = vcmask 1041409
  %v163 = vsel %vm162, %v161, %v152
  %vm164 = vcmask 130048
  %v165 = vsel %vm164, %v163, 0
  %167 = vmatprep.subr.mxu0 0.0
  %168 = vmatpush1.msra.mxu0 %v130
  %169 = vmatprep.subr.mxu0 0.0
  %170 = vmatpush1.msra.mxu0 %v131
  %171 = vmatprep.subr.mxu0 0.0
  %172 = vmatpush1.msra.mxu0 0.0
  %173 = vmatprep.subr.mxu0 0.0
  %174 = vmatpush1.msra.mxu0 0.0
  %175 = vmatprep.subr.mxu0 0.0
  %176 = vmatpush1.msra.mxu0 0.0
  %177 = vmatprep.subr.mxu0 0.0
  %178 = vmatpush1.msra.mxu0 0.0
  %179 = vmatprep.subr.mxu0 0.0
  %180 = vmatpush1.msra.mxu0 0.0
  %181 = vmatprep.subr.mxu0 0.0
  %182 = vmatpush1.msra.mxu0 0.0
  %183 = vmatprep.subr.mxu0 0.0
  %184 = vmatpush1.msra.mxu0 0.0
  %185 = vmatprep.subr.mxu0 0.0
  %186 = vmatpush1.msra.mxu0 0.0
  %187 = vmatprep.subr.mxu0 0.0
  %188 = vmatpush1.msra.mxu0 0.0
  %189 = vmatprep.subr.mxu0 0.0
  %190 = vmatpush1.msra.mxu0 0.0
  %191 = vmatprep.subr.mxu0 0.0
  %192 = vmatpush1.msra.mxu0 0.0
  %193 = vmatprep.subr.mxu0 0.0
  %194 = vmatpush1.msra.mxu0 0.0
  %195 = vmatprep.subr.mxu0 0.0
  %196 = vmatpush1.msra.mxu0 0.0
  %197 = vmatprep.subr.mxu0 0.0
  %198 = vmatpush1.msra.mxu0 0.0
  %199 = vmatprep.subr.mxu0 0.0
  %200 = vmatpush1.msra.mxu0 0.0
  %201 = vmatprep.subr.mxu0 0.0
  %202 = vmatpush1.msra.mxu0 0.0
  %203 = vmatprep.subr.mxu0 0.0
  %204 = vmatpush1.msra.mxu0 0.0
  %205 = vmatprep.subr.mxu0 0.0
  %206 = vmatpush1.msra.mxu0 0.0
  %207 = vmatprep.subr.mxu0 0.0
  %208 = vmatpush1.msra.mxu0 0.0
  %209 = vmatprep.subr.mxu0 0.0
  %210 = vmatpush1.msra.mxu0 0.0
  %211 = vmatprep.subr.mxu0 0.0
  %212 = vmatpush1.msra.mxu0 0.0
  %213 = vmatprep.subr.mxu0 0.0
  %214 = vmatpush1.msra.mxu0 0.0
  %215 = vmatprep.subr.mxu0 0.0
  %216 = vmatpush1.msra.mxu0 0.0
  %217 = vmatprep.subr.mxu0 0.0
  %218 = vmatpush1.msra.mxu0 0.0
  %219 = vmatprep.subr.mxu0 0.0
  %220 = vmatpush1.msra.mxu0 0.0
  %221 = vmatprep.subr.mxu0 0.0
  %222 = vmatpush1.msra.mxu0 0.0
  %223 = vmatprep.subr.mxu0 0.0
  %224 = vmatpush1.msra.mxu0 0.0
  %225 = vmatprep.subr.mxu0 0.0
  %226 = vmatpush1.msra.mxu0 0.0
  %227 = vmatprep.subr.mxu0 0.0
  %228 = vmatpush1.msra.mxu0 0.0
  %229 = vmatprep.subr.mxu0 0.0
  %230 = vmatpush1.msra.mxu0 0.0
  %231 = vmatprep.mubr.f32.mxu0 0.0
  %232 = vmatmul.mubr.f32.gmra.mrb[0].mxu0 %v165
  %v233 = vpop.f32.mrb[0].mxu0
  %v234 = vadd.f32 %v135, %v233
  %v235 = vpop.f32.mrb[0].mxu0
  %236 = vdwg.mxu0
  %vm237 = vcmask 25600
  %v238 = vsel %vm237, %v234, 0.0
  %239 = vadd.xlane.f32.xlu0 %v238
  %v240 = vpop.xlane.xlu0 %239
  %v241 = vrcp.pop 4.0
  %v242 = vmul.f32 %v240, %v241
  %v243 = vsub.f32 %v234, %v242
  %v244 = vmul.f32 %v243, %v243
  %v245 = vsel %vm237, %v244, 0.0
  %246 = vadd.xlane.f32.xlu0 %v245
  %v247 = vpop.xlane.xlu0 %246
  %v248 = vmul.f32 %v247, %v241
  %v249 = vadd.f32 %v248, 1e-05
  %v250 = vrsqrt.pop %v249
  %v251 = vmul.f32 %v243, %v250
  %v252 = vlaneseq
  %v253 = vshrl.u32 %v252, 7
  %v254 = vsub.s32 1, %v253
  %v255 = vrot.slane %v129, %v254
  %v256 = vmul.f32 %v251, %v255
  %v257 = vlaneseq
  %v258 = vshrl.u32 %v257, 7
  %v259 = vsub.s32 2, %v258
  %v260 = vrot.slane %v129, %v259
  %v261 = vadd.f32 %v256, %v260
  %v262 = vmax.f32 %v261, 0.0
  %v263 = vld [vmem:[%s4] sm:$0xff]
  %v264 = vld [vmem:[%s4 + $0x8] sm:$0xff]
  %v267 = vunpack.c.l.s4 1966171168
  %v268 = vunpack.c.0.s8 %v267
  %v269 = vlaneseq
  %v270 = vshrl.u32 %v269, 7
  %v271 = vsub.s32 %v268, %v270
  %v272 = vrot.slane %v262, %v271
  %v273 = vcombine.high %v272, %v272
  %v275 = vunpack.c.l.s4 1966171168
  %v276 = vunpack.c.0.s8 %v275
  %v277 = vlaneseq
  %v278 = vshrl.u32 %v277, 7
  %v279 = vsub.s32 %v276, %v278
  %v280 = vrot.slane %v272, %v279
  %v282 = vunpack.c.l.s4 1966171168
  %v283 = vunpack.c.0.s8 %v282
  %v284 = vlaneseq
  %v285 = vshrl.u32 %v284, 7
  %v286 = vsub.s32 %v283, %v285
  %v287 = vrot.slane %v273, %v286
  %v288 = vlaneseq
  %v289 = vshrl.u32 %v288, 7
  %v290 = vsub.s32 0, %v289
  %v291 = vrot.slane %v280, %v290
  %v292 = vlaneseq
  %v293 = vshrl.u32 %v292, 7
  %v294 = vsub.s32 0, %v293
  %v295 = vrot.slane %v287, %v294
  %v298 = vmul.f32 %v263, %v291
  %v299 = vmul.f32 %v264, %v291
  %v300 = vmul.f32 %v263, %v295
  %v301 = vmul.f32 %v264, %v295
  %vm302 = vcmask 31744
  %v303 = vsel %vm302, %v298, 0.0
  %304 = vadd.xlane.f32.xlu0 %v303
  %v305 = vpop.xlane.xlu0 %304
  %v306 = vsel %vm302, %v299, 0.0
  %307 = vadd.xlane.f32.xlu0 %v306
  %v308 = vpop.xlane.xlu0 %307
  %v309 = vsel %vm302, %v300, 0.0
  %310 = vadd.xlane.f32.xlu0 %v309
  %v311 = vpop.xlane.xlu0 %310
  %v312 = vsel %vm302, %v301, 0.0
  %313 = vadd.xlane.f32.xlu0 %v312
  %v314 = vpop.xlane.xlu0 %313
  %v315 = vld [vmem:[%s5] sm:$0xff]
  %v316 = vld [vmem:[%s5 + $0x8] sm:$0xff]
  %v317 = vadd.f32 %v305, %v315
  %v318 = vadd.f32 %v308, %v316
  %v319 = vadd.f32 %v311, %v315
  %v320 = vadd.f32 %v314, %v316
  %322 = vset.pattern.permute.xlu0 0
  %323 = vperm.xlu0 %322, %v317
  %v324 = vpop.permute.xlu0 %323
  %327 = vset.pattern.permute.xlu0 0
  %328 = vperm.xlu0 %327, %v318
  %v329 = vpop.permute.xlu0 %328
  %332 = vset.pattern.permute.xlu0 0
  %333 = vperm.xlu0 %332, %v319
  %v334 = vpop.permute.xlu0 %333
  %337 = vset.pattern.permute.xlu0 0
  %338 = vperm.xlu0 %337, %v320
  %v339 = vpop.permute.xlu0 %338
  %v341 = vadd.f32 %v23, %v324
  %v342 = vadd.f32 %v24, %v324
  %v343 = vadd.f32 %v25, %v329
  %v344 = vadd.f32 %v26, %v329
  %v345 = vadd.f32 %v27, %v334
  %v346 = vadd.f32 %v28, %v334
  %v347 = vadd.f32 %v29, %v339
  %v348 = vadd.f32 %v30, %v339
  %349 = vst [vmem:[%s6] sm:$0xff] %v341
  %350 = vst [vmem:[%s6 + $0x8] sm:$0xff] %v342
  %351 = vst [vmem:[%s6 + $0x10] sm:$0xff] %v343
  %352 = vst [vmem:[%s6 + $0x18] sm:$0xff] %v344
  %353 = vst [vmem:[%s6 + $0x20] sm:$0xff] %v345
  %354 = vst [vmem:[%s6 + $0x28] sm:$0xff] %v346
  %355 = vst [vmem:[%s6 + $0x30] sm:$0xff] %v347
  %356 = vst [vmem:[%s6 + $0x38] sm:$0xff] %v348
  // Predicated region
  $region26: #{context_block_forward.1} parent=0 // pred_check
    _
  $region27: #{context_block_forward.1} parent=0 // pred_check_branch
    %358 = sbr.rel (0) target = $region29
  $region28: #{context_block_forward.1} parent=0 // pred_region
    _
  $region29: #{context_block_forward.1} parent=0 // pred_fallthru
    _
  // Predicated region
  $region30: #{context_block_forward.1} parent=0 // pred_check
    _
  $region31: #{context_block_forward.1} parent=0 // pred_check_branch
    %360 = sbr.rel (0) target = $region33
  $region32: #{context_block_forward.1} parent=0 // pred_region
    _
  $region33: #{context_block_forward.1} parent=0 // pred_fallthru
    _

</llo_original>
